<compile_context>
chip_gen: v7x
topology: tpu7x:2x2x1
jax: 0.10.0
libtpu: 0.0.40
codegen_flags: <defaults>
</compile_context>

<pallas_src>
import jax
import jax.numpy as jnp
from jax.experimental import pallas as pl
from jax.experimental.pallas import tpu as pltpu


def _mish_kernel(x_ref, o_ref):
    x = x_ref[...]
    xf = x.astype(jnp.float32)
    # Single-exp, overflow-safe Mish (see module docstring). t in (0, 1].
    t = jnp.exp(-jnp.abs(xf))
    t2 = t * t
    pos = xf > 0.0
    num = jnp.where(pos, 1.0 + 2.0 * t, 2.0 * t + t2)
    den = num + jnp.where(pos, 2.0 * t2, 2.0)
    y = xf * (num / den)
    o_ref[...] = y.astype(o_ref.dtype)


def mish_pallas(x: jax.Array, *, target_block_bytes: int = 2 * 1024 * 1024) -> jax.Array:
    """Elementwise Mish over an arbitrary-shaped array (e.g. NCHW)."""
    orig_shape = x.shape
    dtype = x.dtype
    total = x.size
    itemsize = jnp.dtype(dtype).itemsize

    # Pick a lane-dense 2D view *without any data movement* (pure reshape).
    lanes = None
    for cand in (1024, 512, 256, 128):
        if total % cand == 0:
            lanes = cand
            break
    if lanes is not None:
        x2d = x.reshape(total // lanes, lanes)
    else:
        # Fallback: preserve the trailing dim (block last dim == full dim is
        # always legal); still zero-copy, just less lane-dense.
        last = orig_shape[-1] if x.ndim >= 1 else 1
        x2d = x.reshape(-1, last)
        lanes = last

    rows = x2d.shape[0]

    # Block sizing: ~target_block_bytes per block; rows a multiple of 16
    # (covers f32 sublane=8 and bf16 packed sublane=16). A block equal to the
    # full row extent is always legal, so clamp for small inputs.
    block_rows = max(16, target_block_bytes // (lanes * itemsize))
    block_rows = (int(block_rows) // 16) * 16
    if block_rows >= rows:
        block_rows = rows
    grid = (pl.cdiv(rows, block_rows),)

    out2d = pl.pallas_call(
        _mish_kernel,
        out_shape=jax.ShapeDtypeStruct(x2d.shape, dtype),
        grid_spec=pltpu.PrefetchScalarGridSpec(
            num_scalar_prefetch=0,
            grid=grid,
            in_specs=[pl.BlockSpec((block_rows, lanes), lambda i: (i, 0))],
            out_specs=pl.BlockSpec((block_rows, lanes), lambda i: (i, 0)),
        ),
        compiler_params=pltpu.CompilerParams(
            dimension_semantics=("parallel",),
        ),
        cost_estimate=pl.CostEstimate(
            flops=8 * total,
            transcendentals=total,
            bytes_accessed=2 * total * itemsize,
        ),
    )(x2d)

    return out2d.reshape(orig_shape)


def mish_ref(x):
    xf = x.astype(jnp.float32)
    sp = jnp.maximum(xf, 0.0) + jnp.log1p(jnp.exp(-jnp.abs(xf)))
    return (xf * jnp.tanh(sp)).astype(x.dtype)


if __name__ == "__main__":
    key = jax.random.PRNGKey(0)

    # NCHW input matching a typical conv activation: batch=2, channels=4, 16x16.
    x = jax.random.normal(key, (2, 4, 16, 16), dtype=jnp.float32)
    y = mish_pallas(x)
    jax.block_until_ready(y)
    y_ref = mish_ref(x)
    assert y.shape == x.shape and y.dtype == x.dtype
    assert jnp.max(jnp.abs(y - y_ref)) < 1e-4

    # Ragged shape (total not a multiple of 128) exercises the zero-copy
    # trailing-dim fallback path.
    x2 = jax.random.normal(jax.random.PRNGKey(1), (3, 5, 7, 13), dtype=jnp.float32)
    y2 = mish_pallas(x2)
    jax.block_until_ready(y2)
    assert jnp.max(jnp.abs(y2 - mish_ref(x2))) < 1e-4

    # bf16 round-trip: compute-in-f32, cast on store (loose tol: 1 ulp of bf16).
    x3 = jax.random.normal(jax.random.PRNGKey(2), (2, 4, 16, 16), dtype=jnp.bfloat16)
    y3 = mish_pallas(x3)
    jax.block_until_ready(y3)
    assert y3.dtype == jnp.bfloat16
    diff = jnp.max(jnp.abs(y3.astype(jnp.float32) - mish_ref(x3).astype(jnp.float32)))
    assert diff < 6e-2

    print("KERNEL_OK")
</pallas_src>

<mosaic_0001>
module attributes {stable_mosaic.version = 11 : i64} {
  func.func @_mish_kernel(%arg0: i32, %arg1: memref<2x1024xf32, #tpu.memory_space<vmem>>, %arg2: memref<2x1024xf32, #tpu.memory_space<vmem>>) attributes {dimension_semantics = [#tpu.dimension_semantics<parallel>], iteration_bounds = array<i64: 1>, scalar_prefetch = 0 : i64, scratch_operands = 0 : i64, tpu.core_type = #tpu.core_type<tc>, window_params = [{transform_indices = @transform_0, window_bounds = array<i64: 2, 1024>}, {transform_indices = @transform_1, window_bounds = array<i64: 2, 1024>}]} {
    %c0 = arith.constant 0 : index
    %c0_0 = arith.constant 0 : index
    %0 = vector.load %arg1[%c0, %c0_0] : memref<2x1024xf32, #tpu.memory_space<vmem>>, vector<2x1024xf32>
    %1 = math.absf %0 : vector<2x1024xf32>
    %cst = arith.constant 0.000000e+00 : f32
    %2 = vector.broadcast %cst : f32 to vector<2x1024xf32>
    %3 = arith.subf %2, %1 : vector<2x1024xf32>
    %4 = math.exp %3 : vector<2x1024xf32>
    %5 = arith.mulf %4, %4 : vector<2x1024xf32>
    %cst_1 = arith.constant 0.000000e+00 : f32
    %6 = vector.broadcast %cst_1 : f32 to vector<2x1024xf32>
    %7 = arith.cmpf ogt, %0, %6 : vector<2x1024xf32>
    %cst_2 = arith.constant 2.000000e+00 : f32
    %8 = vector.broadcast %cst_2 : f32 to vector<2x1024xf32>
    %9 = arith.mulf %8, %4 : vector<2x1024xf32>
    %cst_3 = arith.constant 1.000000e+00 : f32
    %10 = vector.broadcast %cst_3 : f32 to vector<2x1024xf32>
    %11 = arith.addf %10, %9 : vector<2x1024xf32>
    %cst_4 = arith.constant 2.000000e+00 : f32
    %12 = vector.broadcast %cst_4 : f32 to vector<2x1024xf32>
    %13 = arith.mulf %12, %4 : vector<2x1024xf32>
    %14 = arith.addf %13, %5 : vector<2x1024xf32>
    %15 = arith.select %7, %11, %14 : vector<2x1024xi1>, vector<2x1024xf32>
    %cst_5 = arith.constant 2.000000e+00 : f32
    %16 = vector.broadcast %cst_5 : f32 to vector<2x1024xf32>
    %17 = arith.mulf %16, %5 : vector<2x1024xf32>
    %cst_6 = arith.constant 2.000000e+00 : f32
    %18 = vector.broadcast %cst_6 : f32 to vector<2x1024xf32>
    %19 = arith.select %7, %17, %18 : vector<2x1024xi1>, vector<2x1024xf32>
    %20 = arith.addf %15, %19 : vector<2x1024xf32>
    %21 = arith.divf %15, %20 : vector<2x1024xf32>
    %22 = arith.mulf %0, %21 : vector<2x1024xf32>
    %c0_7 = arith.constant 0 : index
    %c0_8 = arith.constant 0 : index
    %23 = vector.load %arg2[%c0_7, %c0_8] : memref<2x1024xf32, #tpu.memory_space<vmem>>, vector<2x1024xf32>
    tpu.vector_store %arg2[%c0_7, %c0_8], %22 {strides = array<i32>} : memref<2x1024xf32, #tpu.memory_space<vmem>>, vector<2x1024xf32>,
    return
  }
  func.func @transform_0(%arg0: i32) -> (i32, i32) {
    %c0_i32 = arith.constant 0 : i32
    %c0_i32_0 = arith.constant 0 : i32
    return %arg0, %c0_i32 : i32, i32
  }
  func.func @transform_1(%arg0: i32) -> (i32, i32) {
    %c0_i32 = arith.constant 0 : i32
    %c0_i32_0 = arith.constant 0 : i32
    return %arg0, %c0_i32 : i32, i32
  }
}

</mosaic_0001>

<llo_original>
// kernel: tpu_custom_call.1
$region0: #{tpu_custom_call.1}
  #allocation0 [shape = 'u32[]', space=smem, size = 0x4, offset = 0x4, fixed_abs, tag = 'smem constant byte address 0x4 - core index']
  #allocation1 [shape = 'u32[144,128]{1,0:T(1,128)}', space=vmem, size = 0x12000, scoped, tag = 'internal scratch']
  %s0 = inlined_call_operand.hbm [shape: f32[2,1024], index: 0, kind: input, shape index: {}]
  %s1 = inlined_call_operand.hbm [shape: f32[2,1024], index: 1, kind: output, shape index: {}]
  %s2 = sld [smem:[#allocation0]]
  $region18: #{tpu_custom_call.1} parent=0
    _
  %s4 = ssub.s32 1, %s2
  %s5 = scalar_select 0, %s4, %s2
  $region1: #{tpu_custom_call.1} parent=0
    #allocation2 [shape = 'u8[8192]{0}', space=vmem, size = 0x2000, scoped, tag = 'input window, operand 0, single buffered']
    #allocation3 [shape = 's32[1]{0}', space=sflag, size = 0x4, scoped, tag = 'scoped memory for tpu_custom_call.1']
    #allocation4 [shape = 's32[1]{0}', space=sflag, size = 0x4, scoped, tag = 'scoped memory for tpu_custom_call.1']
    #allocation5 [shape = 'u8[8192]{0}', space=vmem, size = 0x2000, scoped, tag = 'output window, operand 0, single buffered']
    %6 = vsyncpa [#allocation3], 0
    %7 = vsyncpa [#allocation4], 0
    // Predicated region
    $region2: #{tpu_custom_call.1} parent=1 // pred_check
      _
    $region3: #{tpu_custom_call.1} parent=1 // pred_check_branch
      %9 = sbr.rel (0) target = $region5
    $region4: #{tpu_custom_call.1} parent=1 // pred_region
      %s11 = ssub.s32 256, 256
      %12 = vsyncadd [#allocation3], %s11
      %s14 = sshll.u32 [#allocation2], 4
      %s15 = int_to_ptr.vmem [resolvable:$true] %s14
      %17 = dma.hbm_to_vmem [thread:$0]  %s0, 256, %s15, [#allocation3]
    $region5: #{tpu_custom_call.1} parent=1 // pred_fallthru
      _
    // Predicated region
    $region6: #{tpu_custom_call.1} parent=1 // pred_check
      _
    $region7: #{tpu_custom_call.1} parent=1 // pred_check_branch
      %19 = sbr.rel (0) target = $region9
    $region8: #{tpu_custom_call.1} parent=1 // pred_region
      %20 = dma.done [#allocation3], 256
    $region9: #{tpu_custom_call.1} parent=1 // pred_fallthru
      _
    %v21 = vld [vmem:[#allocation2] sm:$0xff]
    %v22 = vld [vmem:[#allocation2 + $0x8] sm:$0xff]
    %v23 = vand.u32 2147483647, %v21
    %v24 = vand.u32 2147483647, %v22
    %v25 = vsub.f32 0.0, %v23
    %v26 = vsub.f32 0.0, %v24
    %v27 = vmul.f32 %v25, 1.442695
    %v28 = vpow.pop %v27
    %v29 = vmul.f32 %v26, 1.442695
    %v30 = vpow.pop %v29
    %v31 = vmul.f32 %v28, %v28
    %v32 = vmul.f32 %v30, %v30
    %vm33 = vcmp.gt.f32.partialorder %v21, 0.0
    %vm34 = vcmp.gt.f32.partialorder %v22, 0.0
    %v35 = vmul.f32 %v28, 2.0
    %v36 = vmul.f32 %v30, 2.0
    %v37 = vadd.f32 %v35, 1.0
    %v38 = vadd.f32 %v36, 1.0
    %v39 = vadd.f32 %v35, %v31
    %v40 = vadd.f32 %v36, %v32
    %v41 = vsel %vm33, %v37, %v39
    %v42 = vsel %vm34, %v38, %v40
    %v43 = vmul.f32 %v31, 2.0
    %v44 = vmul.f32 %v32, 2.0
    %v45 = vsel %vm33, %v43, 2.0
    %v46 = vsel %vm34, %v44, 2.0
    %v47 = vadd.f32 %v41, %v45
    %v48 = vadd.f32 %v42, %v46
    %v49 = vrcp.pop %v47
    %v50 = vmul.f32 %v41, %v49
    %v51 = vrcp.pop %v48
    %v52 = vmul.f32 %v42, %v51
    %v53 = vmul.f32 %v21, %v50
    %v54 = vmul.f32 %v22, %v52
    %55 = vst [vmem:[#allocation5] sm:$0xff] %v53
    %56 = vst [vmem:[#allocation5 + $0x8] sm:$0xff] %v54
    // Predicated region
    $region10: #{tpu_custom_call.1} parent=1 // pred_check
      _
    $region11: #{tpu_custom_call.1} parent=1 // pred_check_branch
      %58 = sbr.rel (0) target = $region13
    $region12: #{tpu_custom_call.1} parent=1 // pred_region
      %s60 = ssub.s32 256, 256
      %61 = vsyncadd [#allocation4], %s60
      %s63 = sshll.u32 [#allocation5], 4
      %s64 = int_to_ptr.vmem [resolvable:$true] %s63
      %66 = dma.vmem_to_hbm [thread:$0]  %s64, 256, %s1, [#allocation4]
    $region13: #{tpu_custom_call.1} parent=1 // pred_fallthru
      _
    // Predicated region
    $region14: #{tpu_custom_call.1} parent=1 // pred_check
      _
    $region15: #{tpu_custom_call.1} parent=1 // pred_check_branch
      %68 = sbr.rel (0) target = $region17
    $region16: #{tpu_custom_call.1} parent=1 // pred_region
      %69 = dma.done [#allocation4], 256
    $region17: #{tpu_custom_call.1} parent=1 // pred_fallthru
      _
    %70 = vsyncpa [#allocation3], 1
    %71 = vsyncpa [#allocation4], 1

</llo_original>
